<compile_context>
chip_gen: v5e
topology: v5e:2x2
jax: 0.10.0
libtpu: 0.0.40
codegen_flags: <defaults>
</compile_context>

<pallas_src>
import functools

import numpy as np
import jax
import jax.numpy as jnp
from jax.experimental import pallas as pl
from jax.experimental.pallas import tpu as pltpu


# -----------------------------------------------------------------------------
# Kernels.  For every row r of the current row tile:
#     out[r] = (logsumexp(logits[r, :]) - x_label[r]) * coef[r]
# x_label (logit at the label index) and coef arrive pre-computed in a tiny
# (tm, 2) side array, so the streaming kernel does pure logsumexp work.
# -----------------------------------------------------------------------------
def _ce_single_pass_kernel(tbl_ref, side_ref, logits_ref, out_ref):
    """Whole vocab in one block: plain (numerically stable) logsumexp."""
    del tbl_ref                                            # used only by index_maps
    x = logits_ref[...].astype(jnp.float32)                # (tm, V)
    m = jnp.max(x, axis=-1, keepdims=True)
    lse = m + jnp.log(jnp.sum(jnp.exp(x - m), axis=-1, keepdims=True))
    side = side_ref[...]                                   # (tm, 2): [coef, x_label]
    out_ref[...] = (lse - side[:, 1:2]) * side[:, 0:1]


def _ce_online_kernel(tbl_ref, side_ref, logits_ref, out_ref, m_ref, l_ref,
                      *, vocab, tk):
    """Vocab split over grid axis 1 with online-softmax accumulators."""
    del tbl_ref
    k = pl.program_id(1)
    nk = pl.num_programs(1)

    @pl.when(k == 0)
    def _init():
        m_ref[...] = jnp.full_like(m_ref, -jnp.inf)
        l_ref[...] = jnp.zeros_like(l_ref)

    x = logits_ref[...].astype(jnp.float32)                # (tm, tk)

    def update(xb):
        m_prev = m_ref[...]
        m_new = jnp.maximum(m_prev, jnp.max(xb, axis=-1, keepdims=True))
        l_ref[...] = (jnp.exp(m_prev - m_new) * l_ref[...]
                      + jnp.sum(jnp.exp(xb - m_new), axis=-1, keepdims=True))
        m_ref[...] = m_new

    if vocab % tk != 0:
        # Ragged vocab tail: pay the compare+select ONLY on the last block.
        tail = vocab % tk

        @pl.when(k < nk - 1)
        def _body():
            update(x)

        @pl.when(k == nk - 1)
        def _tail():
            col = jax.lax.broadcasted_iota(jnp.int32, x.shape, 1)
            update(jnp.where(col < tail, x, -jnp.inf))
    else:
        update(x)

    @pl.when(k == nk - 1)
    def _finalize():
        lse = m_ref[...] + jnp.log(l_ref[...])
        side = side_ref[...]
        out_ref[...] = (lse - side[:, 1:2]) * side[:, 0:1]


# -----------------------------------------------------------------------------
# Wrapper.
# -----------------------------------------------------------------------------
def per_token_scaled_ce(logits_2d, labels_1d, coef_1d, row_sel_mask=None, *,
                        block_bytes=8 << 20, max_tk=2048, max_tm=1024):
    """loss[r] = CE(logits_2d[r], labels_1d[r]) * coef_1d[r].

    logits_2d : [R, V], any float dtype (streamed native, f32 math in-kernel).
    row_sel_mask : optional host bool [R]; row tiles containing no selected row
        are skipped entirely (their output rows are left undefined -- callers
        must only consume selected rows).
    """
    R, V = logits_2d.shape
    itemsize = jnp.dtype(logits_2d.dtype).itemsize
    max_tk = max(128, (max_tk // 128) * 128)

    # ---- vocab tile: whole vocab if small; else a 128-multiple divisor of V
    # (no tail mask at all); else max_tk with a last-block-only tail mask. ----
    if V <= max_tk:
        tk = V
    else:
        tk = max_tk
        for t in range(max_tk, 127, -128):
            if V % t == 0:
                tk = t
                break
    single_pass = (tk == V)

    # ---- row tile: ~block_bytes of logits per grid step (multiple of 8). ----
    r8 = ((R + 7) // 8) * 8
    tm = (block_bytes // (tk * itemsize)) // 8 * 8
    tm = int(max(8, min(tm, max_tm, r8)))

    # ---- row-tile table (scalar prefetch): skip tiles with no consumed row. --
    if row_sel_mask is None:
        sel_rows = np.arange(R, dtype=np.int64)
    else:
        sel_rows = np.flatnonzero(np.asarray(row_sel_mask))
    if sel_rows.size == 0:
        return jnp.zeros((R,), jnp.float32)

    def tiles_for(tm_):
        return np.unique(sel_rows // tm_).astype(np.int32)

    tiles = tiles_for(tm)
    # v7x megacore: make sure the "parallel" row axis has >= 2 steps whenever
    # possible (shrink the tile instead of leaving one TensorCore idle).
    while tiles.size < 2 and tm > 8:
        tm = max(8, (tm // 2) // 8 * 8)
        tiles = tiles_for(tm)
    n_tiles = int(tiles.size)
    tile_tbl = jnp.asarray(tiles)                          # int32, lands in SMEM

    # ---- side inputs: per-row [coef, logit_at_label].  The label gather is
    # hoisted out of the streaming kernel (tiny XLA gather, ~R elements). ----
    labels_i = jnp.clip(labels_1d.astype(jnp.int32), 0, V - 1)
    x_label = jnp.take_along_axis(logits_2d, labels_i[:, None], axis=-1)
    x_label = x_label[:, 0].astype(jnp.float32)
    side = jnp.stack([coef_1d.astype(jnp.float32), x_label], axis=-1)   # (R, 2)

    rows_visited = n_tiles * tm
    cost = pl.CostEstimate(
        flops=int(5 * rows_visited * V),
        transcendentals=int(rows_visited * V),
        bytes_accessed=int(rows_visited * V * itemsize + rows_visited * 12))

    if single_pass:
        grid = (n_tiles,)
        kernel = _ce_single_pass_kernel
        in_specs = [
            pl.BlockSpec((tm, 2), lambda i, tbl: (tbl[i], 0)),     # [coef, xlab]
            pl.BlockSpec((tm, tk), lambda i, tbl: (tbl[i], 0)),    # logits
        ]
        out_spec = pl.BlockSpec((tm, 1), lambda i, tbl: (tbl[i], 0))
        scratch = []
        dims = ("parallel",)
    else:
        grid = (n_tiles, pl.cdiv(V, tk))
        kernel = functools.partial(_ce_online_kernel, vocab=V, tk=tk)
        in_specs = [
            pl.BlockSpec((tm, 2), lambda i, k, tbl: (tbl[i], 0)),
            pl.BlockSpec((tm, tk), lambda i, k, tbl: (tbl[i], k)),
        ]
        out_spec = pl.BlockSpec((tm, 1), lambda i, k, tbl: (tbl[i], 0))
        scratch = [pltpu.VMEM((tm, 1), jnp.float32),               # running max
                   pltpu.VMEM((tm, 1), jnp.float32)]               # running sum
        dims = ("parallel", "arbitrary")

    out = pl.pallas_call(
        kernel,
        out_shape=jax.ShapeDtypeStruct((R, 1), jnp.float32),
        grid_spec=pltpu.PrefetchScalarGridSpec(
            num_scalar_prefetch=1,
            grid=grid,
            in_specs=in_specs,
            out_specs=out_spec,
            scratch_shapes=scratch),
        compiler_params=pltpu.CompilerParams(
            dimension_semantics=dims,
            vmem_limit_bytes=32 << 20),      # 8 MiB blocks x2 buffers + scratch
        cost_estimate=cost,
    )(tile_tbl, side, logits_2d)
    return out[:, 0]


# -----------------------------------------------------------------------------
# Mask helpers (numpy ports of the torch functions) — host-side glue, since the
# segment counting (.item()/assert) and the output shape are data-dependent.
# -----------------------------------------------------------------------------
def create_in_media_segment_mask(sequence, soi_id, eoi_id):
    is_start = sequence == soi_id
    is_end = sequence == eoi_id
    has_complete = is_start.any(-1) & is_end.any(-1)
    cs = np.cumsum(is_start, axis=1)
    ce = np.cumsum(is_end, axis=1)
    in_seg = (cs > ce) | is_start | is_end
    return in_seg, has_complete


def create_in_media_segment_mask_list(sequence, soi_id, eoi_id):
    is_start = sequence == soi_id
    is_end = sequence == eoi_id
    has_complete = is_start.any(-1) & is_end.any(-1)
    cs = np.cumsum(is_start, axis=1)
    ce = np.cumsum(is_end, axis=1)
    num = int(is_start.sum(axis=1).max())
    assert (is_start.sum(axis=1) == num).all()
    masks = []
    for i in range(1, num + 1):
        in_seg = (cs >= i) & (ce < i)
        in_seg = in_seg | ((cs == i) & is_end)
        masks.append(in_seg)
    return masks, has_complete


# -----------------------------------------------------------------------------
# Module equivalent.
# -----------------------------------------------------------------------------
class CrossEntropyFrameDecay:
    def __init__(self, frame_num, special_token, start_coef, end_coef=1.0):
        # Deterministic "parameter": linspace of per-frame decay coefficients.
        self.frame_coef = np.linspace(start_coef, end_coef, frame_num).astype(np.float32)
        self.special_token = special_token

    def __call__(self, logits, labels):
        st = self.special_token
        labels_np = np.asarray(labels)

        # Computed for parity with the reference module (unused in the output).
        _video_mask, _has_video = create_in_media_segment_mask(
            labels_np, st['video_start_token'], st['video_end_token'])
        image_mask_list, _has_image = create_in_media_segment_mask_list(
            labels_np, st['image_start_token'], st['image_end_token'])

        N, L, V = logits.shape

        # Per-token decay coefficient (frame masks are disjoint by construction)
        # and the union mask of rows actually consumed downstream: the kernel
        # skips row tiles that contain no frame token at all.
        coef_map = np.zeros((N, L), dtype=np.float32)
        sel_mask = np.zeros((N, L), dtype=bool)
        for mask, coef in zip(image_mask_list, self.frame_coef):
            coef_map += mask.astype(np.float32) * coef
            sel_mask |= mask

        scaled = per_token_scaled_ce(
            logits.reshape(N * L, V),                # native dtype (bf16 OK)
            jnp.asarray(labels_np.reshape(N * L).astype(np.int32)),
            jnp.asarray(coef_map.reshape(N * L)),
            row_sel_mask=sel_mask.reshape(N * L),
        )

        # TODO(synk): the per-frame boolean gather + torch.cat has a data-
        # dependent output shape; indices are computed on host and the gather
        # is an eager jnp.take (not expressible as a fixed-shape Pallas kernel).
        idx = np.concatenate(
            [np.flatnonzero(m.reshape(-1)) for m in image_mask_list]).astype(np.int32)
        return jnp.take(scaled, jnp.asarray(idx), axis=0)


# -----------------------------------------------------------------------------
# Example / self-check.
# -----------------------------------------------------------------------------
def _reference_module(logits, labels_np, module):
    """Pure-JAX/numpy reference of the forward pass."""
    st = module.special_token
    image_mask_list, _ = create_in_media_segment_mask_list(
        labels_np, st['image_start_token'], st['image_end_token'])
    logp = jax.nn.log_softmax(jnp.asarray(logits, jnp.float32), axis=-1)
    ce = -jnp.take_along_axis(
        logp, jnp.asarray(labels_np)[..., None].astype(jnp.int32), axis=-1)[..., 0]
    ce_np = np.asarray(ce)
    outs = [ce_np[m] * c for m, c in zip(image_mask_list, module.frame_coef)]
    return np.concatenate(outs)


if __name__ == "__main__":
    key = jax.random.PRNGKey(0)
    N, L, V = 2, 64, 512
    frame_num = 3

    special_token = dict(
        video_start_token=502, video_end_token=503,
        image_start_token=500, image_end_token=501,
        sep_token=504,
    )

    k_logits, k_labels = jax.random.split(key)
    logits = jax.random.normal(k_logits, (N, L, V), dtype=jnp.float32)

    # np.array(...) makes a writable host copy.
    labels_np = np.array(jax.random.randint(k_labels, (N, L), 0, 480), dtype=np.int32)
    # Insert 3 image segments per sequence (same count per sequence, required).
    seg_pos = [((4, 18), (24, 38), (44, 58)),
               ((6, 20), (26, 40), (46, 60))]
    for n in range(N):
        for (s, e) in seg_pos[n]:
            labels_np[n, s] = special_token['image_start_token']
            labels_np[n, e] = special_token['image_end_token']
    labels = jnp.asarray(labels_np)

    module = CrossEntropyFrameDecay(frame_num, special_token, start_coef=2.0, end_coef=1.0)
    out = jax.block_until_ready(module(logits, labels))

    ref = _reference_module(logits, labels_np, module)
    assert out.shape == ref.shape
    assert np.allclose(np.asarray(out), ref, rtol=1e-5, atol=1e-5)

    # --- extra coverage: online-softmax path (vocab split over grid axis 1) ---
    # (a) tk = 128-multiple divisor of V -> no tail mask at all.
    got = per_token_scaled_ce(
        logits.reshape(N * L, V),
        jnp.asarray(labels_np.reshape(-1).astype(np.int32)),
        jnp.ones((N * L,), jnp.float32),
        max_tk=128)
    logp = jax.nn.log_softmax(logits.reshape(N * L, V).astype(jnp.float32), axis=-1)
    want = -jnp.take_along_axis(
        logp, jnp.asarray(labels_np.reshape(-1, 1).astype(np.int32)), axis=-1)[:, 0]
    assert np.allclose(np.asarray(got), np.asarray(want), rtol=1e-5, atol=1e-5)

    # (b) ragged vocab tail (V % tk != 0) -> last-block-only mask path.
    R2, V2 = 64, 320
    k1, k2 = jax.random.split(jax.random.PRNGKey(1))
    l2 = jax.random.normal(k1, (R2, V2), dtype=jnp.float32)
    lab2 = jax.random.randint(k2, (R2,), 0, V2)
    coef2 = jnp.linspace(0.5, 2.0, R2, dtype=jnp.float32)
    got2 = per_token_scaled_ce(l2, lab2, coef2, max_tk=256)
    lp2 = jax.nn.log_softmax(l2, axis=-1)
    want2 = -jnp.take_along_axis(lp2, lab2[:, None], axis=-1)[:, 0] * coef2
    assert np.allclose(np.asarray(got2), np.asarray(want2), rtol=1e-5, atol=1e-5)

    print("KERNEL_OK")
</pallas_src>

<mosaic_0001>
module attributes {stable_mosaic.version = 11 : i64} {
  func.func @_ce_single_pass_kernel(%arg0: i32, %arg1: memref<2xi32, #tpu.memory_space<smem>>, %arg2: memref<64x2xf32, #tpu.memory_space<vmem>>, %arg3: memref<64x512xf32, #tpu.memory_space<vmem>>, %arg4: memref<64x1xf32, #tpu.memory_space<vmem>>) attributes {dimension_semantics = [#tpu.dimension_semantics<parallel>], iteration_bounds = array<i64: 2>, scalar_prefetch = 1 : i64, scratch_operands = 0 : i64, tpu.core_type = #tpu.core_type<tc>, window_params = [{transform_indices = @transform_0, window_bounds = array<i64: 64, 2>}, {transform_indices = @transform_1, window_bounds = array<i64: 64, 512>}, {transform_indices = @transform_2, window_bounds = array<i64: 64, 1>}]} {
    %c0 = arith.constant 0 : index
    %c0_0 = arith.constant 0 : index
    %0 = vector.load %arg3[%c0, %c0_0] : memref<64x512xf32, #tpu.memory_space<vmem>>, vector<64x512xf32>
    %cst = arith.constant dense<0xFF800000> : vector<64xf32>
    %1 = vector.multi_reduction <maximumf>, %0, %cst [1] : vector<64x512xf32> to vector<64xf32>
    %2 = vector.shape_cast %1 : vector<64xf32> to vector<64x1xf32>
    %3 = vector.broadcast %2 : vector<64x1xf32> to vector<64x512xf32>
    %4 = arith.subf %0, %3 : vector<64x512xf32>
    %5 = math.exp %4 : vector<64x512xf32>
    %cst_1 = arith.constant dense<0.000000e+00> : vector<64xf32>
    %6 = vector.multi_reduction <add>, %5, %cst_1 [1] : vector<64x512xf32> to vector<64xf32>
    %7 = vector.shape_cast %6 : vector<64xf32> to vector<64x1xf32>
    %8 = math.log %7 : vector<64x1xf32>
    %9 = arith.addf %2, %8 : vector<64x1xf32>
    %c0_2 = arith.constant 0 : index
    %c0_3 = arith.constant 0 : index
    %10 = vector.load %arg2[%c0_2, %c0_3] : memref<64x2xf32, #tpu.memory_space<vmem>>, vector<64x2xf32>
    %11 = vector.extract_strided_slice %10 {offsets = [0, 1], sizes = [64, 1], strides = [1, 1]} : vector<64x2xf32> to vector<64x1xf32>
    %12 = arith.subf %9, %11 : vector<64x1xf32>
    %13 = vector.extract_strided_slice %10 {offsets = [0, 0], sizes = [64, 1], strides = [1, 1]} : vector<64x2xf32> to vector<64x1xf32>
    %14 = arith.mulf %12, %13 : vector<64x1xf32>
    %c0_4 = arith.constant 0 : index
    %c0_5 = arith.constant 0 : index
    %15 = vector.load %arg4[%c0_4, %c0_5] : memref<64x1xf32, #tpu.memory_space<vmem>>, vector<64x1xf32>
    tpu.vector_store %arg4[%c0_4, %c0_5], %14 {strides = array<i32>} : memref<64x1xf32, #tpu.memory_space<vmem>>, vector<64x1xf32>,
    return
  }
  func.func @transform_0(%arg0: i32, %arg1: memref<2xi32, #tpu.memory_space<smem>>) -> (i32, i32) {
    %0 = arith.index_cast %arg0 : i32 to index
    %1 = memref.load %arg1[%0] : memref<2xi32, #tpu.memory_space<smem>>
    %c0_i32 = arith.constant 0 : i32
    %c0_i32_0 = arith.constant 0 : i32
    return %1, %c0_i32 : i32, i32
  }
  func.func @transform_1(%arg0: i32, %arg1: memref<2xi32, #tpu.memory_space<smem>>) -> (i32, i32) {
    %0 = arith.index_cast %arg0 : i32 to index
    %1 = memref.load %arg1[%0] : memref<2xi32, #tpu.memory_space<smem>>
    %c0_i32 = arith.constant 0 : i32
    %c0_i32_0 = arith.constant 0 : i32
    return %1, %c0_i32 : i32, i32
  }
  func.func @transform_2(%arg0: i32, %arg1: memref<2xi32, #tpu.memory_space<smem>>) -> (i32, i32) {
    %0 = arith.index_cast %arg0 : i32 to index
    %1 = memref.load %arg1[%0] : memref<2xi32, #tpu.memory_space<smem>>
    %c0_i32 = arith.constant 0 : i32
    %c0_i32_0 = arith.constant 0 : i32
    return %1, %c0_i32 : i32, i32
  }
}

</mosaic_0001>

<llo_original>
// kernel: tpu_custom_call.1
$region0: #{tpu_custom_call.1}
  #allocation0 [shape = 'u32[]', space=smem, size = 0x4, offset = 0x4, fixed_abs, tag = 'smem constant byte address 0x4 - core index']
  #allocation1 [shape = 'u32[72,128]{1,0:T(1,128)}', space=vmem, size = 0x9000, scoped, tag = 'internal scratch']
  #allocation2 [shape = 's32[1]{0}', space=sflag, size = 0x4, scoped, tag = 'scoped memory for tpu_custom_call.1']
  #allocation3 [shape = 'u8[512]{0}', space=smem, size = 0x200, scoped, tag = 'prefetched SMEM operand 0']
  %s0 = inlined_call_operand.vmem [shape: s32[2], index: 0, kind: input, shape index: {}]
  %s1 = inlined_call_operand.vmem [shape: f32[128,2], index: 1, kind: input, shape index: {}]
  %s2 = inlined_call_operand.hbm [shape: f32[128,512], index: 2, kind: input, shape index: {}]
  %s3 = inlined_call_operand.vmem [shape: f32[128,1], index: 3, kind: output, shape index: {}]
  %s4 = sld [smem:[#allocation0]]
  $region45: #{tpu_custom_call.1} parent=0
    _
  %s6 = ssub.s32 1, %s4
  %s7 = scalar_select 0, %s6, %s4
  %s9 = sshll.u32 %s0, 4
  %s10 = int_to_ptr.vmem [resolvable:$true] %s9
  %12 = dma.vmem_to_smem %s10, 16, [#allocation3], [#allocation2]
  %14 = dma.done [#allocation2], 16
  %15 = sfence
  $region1: #{tpu_custom_call.1} parent=0
    #allocation4 [shape = 'u8[262144]{0}', space=vmem, size = 0x40000, scoped, tag = 'input window, operand 2']
    #allocation5 [shape = 's32[2]{0}', space=sflag, size = 0x8, scoped, tag = 'scoped memory for tpu_custom_call.1']
    %16 = vsyncpa [#allocation5], 0
    %s17 = scalar_lea.sflag [#allocation5], 1
    %18 = vsyncpa %s17, 0
    loop: start=0, step=1, limit=4
    $region2: #{tpu_custom_call.1} parent=1 // loop_pre_header
      _
    $region3: #{tpu_custom_call.1} parent=1 // loop_header
      %s20 = sphi 0, %s24
      %p21 = scmp.ge.s32.totalorder %s20, 4
      %s32 = sphi 0, %s34
      %s35 = sphi 0, %s32
      %s36 = sphi 0, %s35
      %s52 = sphi 0, %s36
      %s60 = sphi 0, %s62
      %s63 = sphi 0, %s60
      %s64 = sphi 0, %s63
      %s80 = sphi 0, %s64
      %s88 = sphi 0, %s90
      %s91 = sphi 0, %s88
      %s92 = sphi 0, %s91
      %s108 = sphi 0, %s92
    $region4: #{tpu_custom_call.1} parent=1 // loop_header_branch
      %23 = sbr.rel (%p21) target = $region8
    $region5: #{tpu_custom_call.1} parent=1 // loop_body
      %s25 = ssub.s32 %s20, 1
      %s26 = ssub.s32 %s20, 2
      %s27 = sadd.s32 %s20, 1
      %s28 = sld [smem:[#allocation3 + %s20]]
      %s29 = sld [smem:[#allocation3 + %s27]]
      %s30 = ssub.s32 %s28, %s29
      %p31 = scmp.eq.s32.totalorder %s30, 0
      %s33 = sadd.s32 %s32, 1
      %s34 = scalar_select %p31, %s32, %s33
      %p37 = pneg %p31
      %p38 = scmp.eq.s32.totalorder %s20, 1
      %p39 = por %p37, %p38
      %p40 = scmp.ne.s32.totalorder %s32, %s35
      %p41 = scmp.eq.s32.totalorder %s20, 0
      %p42 = por %p40, %p41
      %p43 = scmp.ne.s32.totalorder %s32, %s35
      %p44 = scmp.eq.s32.totalorder %s25, 1
      %p45 = por %p43, %p44
      %p46 = scmp.ne.s32.totalorder %s35, %s36
      %p47 = scmp.eq.s32.totalorder %s25, 0
      %p48 = por %p46, %p47
      %p49 = scmp.ne.s32.totalorder %s35, %s36
      %p50 = scmp.eq.s32.totalorder %s26, 1
      %p51 = por %p49, %p50
      %p53 = scmp.ne.s32.totalorder %s36, %s52
      %p54 = scmp.eq.s32.totalorder %s26, 0
      %p55 = por %p53, %p54
      %s56 = sld [smem:[#allocation3 + %s20]]
      %s57 = sld [smem:[#allocation3 + %s27]]
      %s58 = ssub.s32 %s56, %s57
      %p59 = scmp.eq.s32.totalorder %s58, 0
      %s61 = sadd.s32 %s60, 1
      %s62 = scalar_select %p59, %s60, %s61
      %p65 = pneg %p59
      %p66 = scmp.eq.s32.totalorder %s20, 1
      %p67 = por %p65, %p66
      %p68 = scmp.ne.s32.totalorder %s60, %s63
      %p69 = scmp.eq.s32.totalorder %s20, 0
      %p70 = por %p68, %p69
      %p71 = scmp.ne.s32.totalorder %s60, %s63
      %p72 = scmp.eq.s32.totalorder %s25, 1
      %p73 = por %p71, %p72
      %p74 = scmp.ne.s32.totalorder %s63, %s64
      %p75 = scmp.eq.s32.totalorder %s25, 0
      %p76 = por %p74, %p75
      %p77 = scmp.ne.s32.totalorder %s63, %s64
      %p78 = scmp.eq.s32.totalorder %s26, 1
      %p79 = por %p77, %p78
      %p81 = scmp.ne.s32.totalorder %s64, %s80
      %p82 = scmp.eq.s32.totalorder %s26, 0
      %p83 = por %p81, %p82
      %s84 = sld [smem:[#allocation3 + %s20]]
      %s85 = sld [smem:[#allocation3 + %s27]]
      %s86 = ssub.s32 %s84, %s85
      %p87 = scmp.eq.s32.totalorder %s86, 0
      %s89 = sadd.s32 %s88, 1
      %s90 = scalar_select %p87, %s88, %s89
      %p93 = pneg %p87
      %p94 = scmp.eq.s32.totalorder %s20, 1
      %p95 = por %p93, %p94
      %p96 = scmp.ne.s32.totalorder %s88, %s91
      %p97 = scmp.eq.s32.totalorder %s20, 0
      %p98 = por %p96, %p97
      %p99 = scmp.ne.s32.totalorder %s88, %s91
      %p100 = scmp.eq.s32.totalorder %s25, 1
      %p101 = por %p99, %p100
      %p102 = scmp.ne.s32.totalorder %s91, %s92
      %p103 = scmp.eq.s32.totalorder %s25, 0
      %p104 = por %p102, %p103
      %p105 = scmp.ne.s32.totalorder %s91, %s92
      %p106 = scmp.eq.s32.totalorder %s26, 1
      %p107 = por %p105, %p106
      %p109 = scmp.ne.s32.totalorder %s92, %s108
      %p110 = scmp.eq.s32.totalorder %s26, 0
      %p111 = por %p109, %p110
      %p112 = scmp.le.s32.totalorder 1, %s20
      %p113 = scmp.lt.s32.totalorder %s20, 3
      %p114 = pnand %p112, %p113
      %p115 = pneg %p114
      // Predicated region
      $region9: #{tpu_custom_call.1} parent=5 // pred_check
        _
      $region10: #{tpu_custom_call.1} parent=5 // pred_check_branch
        %117 = sbr.rel (%p114) target = $region12
      $region11: #{tpu_custom_call.1} parent=5 // pred_region
        %s118 = ssub.s32 %s20, 1
      $region12: #{tpu_custom_call.1} parent=5 // pred_fallthru
        _
      %p119 = scmp.lt.s32.totalorder %s20, 2
      // Predicated region
      $region13: #{tpu_custom_call.1} parent=5 // pred_check
        %p120 = pneg %p119
      $region14: #{tpu_custom_call.1} parent=5 // pred_check_branch
        %122 = sbr.rel (%p120) target = $region16
      $region15: #{tpu_custom_call.1} parent=5 // pred_region
        // Predicated region
        $region17: #{tpu_custom_call.1} parent=15 // pred_check
          %p123 = pneg %p42
        $region18: #{tpu_custom_call.1} parent=15 // pred_check_branch
          %125 = sbr.rel (%p123) target = $region20
        $region19: #{tpu_custom_call.1} parent=15 // pred_region
          %s126 = sld [smem:[#allocation3 + %s20]]
          %s127 = smul.u32 8, %s126
          %p128 = scmp.lt.s32.totalorder %s127, 15
          %s129 = scalar_select %p128, %s127, 15
          %s130 = smul.addr %s129, 8
          %s131 = scalar_lea.vmem %s1, %s130
          %s132 = sld [smem:[#allocation3 + %s20]]
          %s133 = smul.u32 8, %s132
        $region20: #{tpu_custom_call.1} parent=15 // pred_fallthru
          _
        // Predicated region
        $region21: #{tpu_custom_call.1} parent=15 // pred_check
          %p134 = pneg %p70
        $region22: #{tpu_custom_call.1} parent=15 // pred_check_branch
          %136 = sbr.rel (%p134) target = $region24
        $region23: #{tpu_custom_call.1} parent=15 // pred_region
          %s137 = sand.u32 %s60, 1
          %s138 = scalar_lea.sflag [#allocation5], %s137
          %s139 = sand.u32 %s60, 1
          %s140 = smul.addr %s139, 256
          %s141 = scalar_lea.vmem [#allocation4], %s140
          %s142 = sld [smem:[#allocation3 + %s20]]
          %s143 = smul.u32 8, %s142
          %145 = vsyncadd %s138, 0
          %s146 = smul.addr %s143, 4
          %s147 = smul.addr %s146, 8
          %s148 = scalar_lea.hbm %s2, %s147
          %s149 = sshll.u32 %s148, 4
          %s150 = int_to_ptr.hbm [resolvable:$true] %s149
          %s151 = sshll.u32 %s141, 4
          %s152 = int_to_ptr.vmem [resolvable:$true] %s151
          %157 = dma.hbm_to_vmem [thread:$0]  %s150, 4096, %s152, %s138, 512, 512, 32
        $region24: #{tpu_custom_call.1} parent=15 // pred_fallthru
          _
      $region16: #{tpu_custom_call.1} parent=5 // pred_fallthru
        _
      %p158 = scmp.le.s32.totalorder 1, %s20
      %p159 = scmp.lt.s32.totalorder %s20, 3
      %p160 = pnand %p158, %p159
      %p161 = pneg %p160
      // Predicated region
      $region25: #{tpu_custom_call.1} parent=5 // pred_check
        _
      $region26: #{tpu_custom_call.1} parent=5 // pred_check_branch
        %163 = sbr.rel (%p160) target = $region28
      $region27: #{tpu_custom_call.1} parent=5 // pred_region
        %s164 = ssub.s32 %s20, 1
        %s165 = sand.u32 %s63, 1
        %s166 = scalar_lea.sflag [#allocation5], %s165
        %s167 = sand.u32 %s63, 1
        %s168 = smul.addr %s167, 256
        %s169 = scalar_lea.vmem [#allocation4], %s168
        // Predicated region
        $region29: #{tpu_custom_call.1} parent=27 // pred_check
          %p170 = pneg %p76
        $region30: #{tpu_custom_call.1} parent=27 // pred_check_branch
          %172 = sbr.rel (%p170) target = $region32
        $region31: #{tpu_custom_call.1} parent=27 // pred_region
          %174 = dma.done %s166, 4096
        $region32: #{tpu_custom_call.1} parent=27 // pred_fallthru
          _
        %s175 = sld [smem:[#allocation3 + %s25]]
        %s176 = smul.u32 8, %s175
        %p177 = scmp.lt.s32.totalorder %s176, 15
        %s178 = scalar_select %p177, %s176, 15
        %s179 = smul.addr %s178, 8
        %s180 = scalar_lea.vmem %s1, %s179
        %p181 = pneg %p48
        %p182 = pneg %p45
        %s183 = sand.u32 %s63, 1
        %s184 = scalar_lea.sflag [#allocation5], %s183
        %s185 = sand.u32 %s63, 1
        %s186 = smul.addr %s185, 256
        %s187 = scalar_lea.vmem [#allocation4], %s186
        %p188 = pneg %p76
        %p189 = pneg %p73
        %p190 = pneg %p104
        %p191 = pneg %p101
        %s192 = sld [smem:[#allocation3 + %s25]]
        %s193 = smul.u32 8, %s192
        %p194 = scmp.lt.s32.totalorder %s193, 15
        %s195 = scalar_select %p194, %s193, 15
        %s196 = smul.addr %s195, 8
        %s197 = scalar_lea.vmem %s3, %s196
        %s198 = sld [smem:[#allocation3 + %s25]]
        %s199 = smul.u32 8, %s198
        %p200 = scmp.lt.s32.totalorder %s199, 15
        %s201 = scalar_select %p200, %s199, 15
        %s202 = smul.addr %s201, 8
        %s203 = scalar_lea.vmem %s1, %s202
        %s204 = sld [smem:[#allocation3 + %s25]]
        %s205 = smul.u32 8, %s204
        %s206 = sld [smem:[#allocation3 + %s25]]
        %s207 = smul.u32 8, %s206
        %s208 = sld [smem:[#allocation3 + %s25]]
        %s209 = smul.u32 8, %s208
        %p210 = scmp.lt.s32.totalorder %s209, 15
        %s211 = scalar_select %p210, %s209, 15
        %s212 = smul.addr %s211, 8
        %s213 = scalar_lea.vmem %s3, %s212
        %s214 = sld [smem:[#allocation3 + %s25]]
        %s215 = smul.u32 8, %s214
        %v216 = vld [vmem:[%s169] sm:$0xff]
        %v217 = vld [vmem:[%s169 + $0x8] sm:$0xff]
        %v218 = vld [vmem:[%s169 + $0x10] sm:$0xff]
        %v219 = vld [vmem:[%s169 + $0x18] sm:$0xff]
        %v220 = vld [vmem:[%s169 + $0x20] sm:$0xff]
        %v221 = vld [vmem:[%s169 + $0x28] sm:$0xff]
        %v222 = vld [vmem:[%s169 + $0x30] sm:$0xff]
        %v223 = vld [vmem:[%s169 + $0x38] sm:$0xff]
        %v224 = vld [vmem:[%s169 + $0x40] sm:$0xff]
        %v225 = vld [vmem:[%s169 + $0x48] sm:$0xff]
        %v226 = vld [vmem:[%s169 + $0x50] sm:$0xff]
        %v227 = vld [vmem:[%s169 + $0x58] sm:$0xff]
        %v228 = vld [vmem:[%s169 + $0x60] sm:$0xff]
        %v229 = vld [vmem:[%s169 + $0x68] sm:$0xff]
        %v230 = vld [vmem:[%s169 + $0x70] sm:$0xff]
        %v231 = vld [vmem:[%s169 + $0x78] sm:$0xff]
        %v232 = vld [vmem:[%s169 + $0x80] sm:$0xff]
        %v233 = vld [vmem:[%s169 + $0x88] sm:$0xff]
        %v234 = vld [vmem:[%s169 + $0x90] sm:$0xff]
        %v235 = vld [vmem:[%s169 + $0x98] sm:$0xff]
        %v236 = vld [vmem:[%s169 + $0xa0] sm:$0xff]
        %v237 = vld [vmem:[%s169 + $0xa8] sm:$0xff]
        %v238 = vld [vmem:[%s169 + $0xb0] sm:$0xff]
        %v239 = vld [vmem:[%s169 + $0xb8] sm:$0xff]
        %v240 = vld [vmem:[%s169 + $0xc0] sm:$0xff]
        %v241 = vld [vmem:[%s169 + $0xc8] sm:$0xff]
        %v242 = vld [vmem:[%s169 + $0xd0] sm:$0xff]
        %v243 = vld [vmem:[%s169 + $0xd8] sm:$0xff]
        %v244 = vld [vmem:[%s169 + $0xe0] sm:$0xff]
        %v245 = vld [vmem:[%s169 + $0xe8] sm:$0xff]
        %v246 = vld [vmem:[%s169 + $0xf0] sm:$0xff]
        %v247 = vld [vmem:[%s169 + $0xf8] sm:$0xff]
        %v248 = vmax.f32 %v216, %v217
        %v249 = vmax.f32 %v248, %v218
        %v250 = vmax.f32 %v249, %v219
        %251 = vmax.xlane.f32.xlu0 %v250
        %v252 = vpop.xlane.xlu0 %251
        %v253 = vmax.f32 %v220, %v221
        %v254 = vmax.f32 %v253, %v222
        %v255 = vmax.f32 %v254, %v223
        %256 = vmax.xlane.f32.xlu0 %v255
        %v257 = vpop.xlane.xlu0 %256
        %v258 = vmax.f32 %v224, %v225
        %v259 = vmax.f32 %v258, %v226
        %v260 = vmax.f32 %v259, %v227
        %261 = vmax.xlane.f32.xlu0 %v260
        %v262 = vpop.xlane.xlu0 %261
        %v263 = vmax.f32 %v228, %v229
        %v264 = vmax.f32 %v263, %v230
        %v265 = vmax.f32 %v264, %v231
        %266 = vmax.xlane.f32.xlu0 %v265
        %v267 = vpop.xlane.xlu0 %266
        %v268 = vmax.f32 %v232, %v233
        %v269 = vmax.f32 %v268, %v234
        %v270 = vmax.f32 %v269, %v235
        %271 = vmax.xlane.f32.xlu0 %v270
        %v272 = vpop.xlane.xlu0 %271
        %v273 = vmax.f32 %v236, %v237
        %v274 = vmax.f32 %v273, %v238
        %v275 = vmax.f32 %v274, %v239
        %276 = vmax.xlane.f32.xlu0 %v275
        %v277 = vpop.xlane.xlu0 %276
        %v278 = vmax.f32 %v240, %v241
        %v279 = vmax.f32 %v278, %v242
        %v280 = vmax.f32 %v279, %v243
        %281 = vmax.xlane.f32.xlu0 %v280
        %v282 = vpop.xlane.xlu0 %281
        %v283 = vmax.f32 %v244, %v245
        %v284 = vmax.f32 %v283, %v246
        %v285 = vmax.f32 %v284, %v247
        %286 = vmax.xlane.f32.xlu0 %v285
        %v287 = vpop.xlane.xlu0 %286
        %v288 = vsub.f32 %v216, %v252
        %v289 = vsub.f32 %v217, %v252
        %v290 = vsub.f32 %v218, %v252
        %v291 = vsub.f32 %v219, %v252
        %v292 = vsub.f32 %v220, %v257
        %v293 = vsub.f32 %v221, %v257
        %v294 = vsub.f32 %v222, %v257
        %v295 = vsub.f32 %v223, %v257
        %v296 = vsub.f32 %v224, %v262
        %v297 = vsub.f32 %v225, %v262
        %v298 = vsub.f32 %v226, %v262
        %v299 = vsub.f32 %v227, %v262
        %v300 = vsub.f32 %v228, %v267
        %v301 = vsub.f32 %v229, %v267
        %v302 = vsub.f32 %v230, %v267
        %v303 = vsub.f32 %v231, %v267
        %v304 = vsub.f32 %v232, %v272
        %v305 = vsub.f32 %v233, %v272
        %v306 = vsub.f32 %v234, %v272
        %v307 = vsub.f32 %v235, %v272
        %v308 = vsub.f32 %v236, %v277
        %v309 = vsub.f32 %v237, %v277
        %v310 = vsub.f32 %v238, %v277
        %v311 = vsub.f32 %v239, %v277
        %v312 = vsub.f32 %v240, %v282
        %v313 = vsub.f32 %v241, %v282
        %v314 = vsub.f32 %v242, %v282
        %v315 = vsub.f32 %v243, %v282
        %v316 = vsub.f32 %v244, %v287
        %v317 = vsub.f32 %v245, %v287
        %v318 = vsub.f32 %v246, %v287
        %v319 = vsub.f32 %v247, %v287
        %v320 = vmul.f32 %v288, 1.442695
        %v321 = vpow.pop %v320
        %v322 = vmul.f32 %v289, 1.442695
        %v323 = vpow.pop %v322
        %v324 = vmul.f32 %v290, 1.442695
        %v325 = vpow.pop %v324
        %v326 = vmul.f32 %v291, 1.442695
        %v327 = vpow.pop %v326
        %v328 = vmul.f32 %v292, 1.442695
        %v329 = vpow.pop %v328
        %v330 = vmul.f32 %v293, 1.442695
        %v331 = vpow.pop %v330
        %v332 = vmul.f32 %v294, 1.442695
        %v333 = vpow.pop %v332
        %v334 = vmul.f32 %v295, 1.442695
        %v335 = vpow.pop %v334
        %v336 = vmul.f32 %v296, 1.442695
        %v337 = vpow.pop %v336
        %v338 = vmul.f32 %v297, 1.442695
        %v339 = vpow.pop %v338
        %v340 = vmul.f32 %v298, 1.442695
        %v341 = vpow.pop %v340
        %v342 = vmul.f32 %v299, 1.442695
        %v343 = vpow.pop %v342
        %v344 = vmul.f32 %v300, 1.442695
        %v345 = vpow.pop %v344
        %v346 = vmul.f32 %v301, 1.442695
        %v347 = vpow.pop %v346
        %v348 = vmul.f32 %v302, 1.442695
        %v349 = vpow.pop %v348
        %v350 = vmul.f32 %v303, 1.442695
        %v351 = vpow.pop %v350
        %v352 = vmul.f32 %v304, 1.442695
        %v353 = vpow.pop %v352
        %v354 = vmul.f32 %v305, 1.442695
        %v355 = vpow.pop %v354
        %v356 = vmul.f32 %v306, 1.442695
        %v357 = vpow.pop %v356
        %v358 = vmul.f32 %v307, 1.442695
        %v359 = vpow.pop %v358
        %v360 = vmul.f32 %v308, 1.442695
        %v361 = vpow.pop %v360
        %v362 = vmul.f32 %v309, 1.442695
        %v363 = vpow.pop %v362
        %v364 = vmul.f32 %v310, 1.442695
        %v365 = vpow.pop %v364
        %v366 = vmul.f32 %v311, 1.442695
        %v367 = vpow.pop %v366
        %v368 = vmul.f32 %v312, 1.442695
        %v369 = vpow.pop %v368
        %v370 = vmul.f32 %v313, 1.442695
        %v371 = vpow.pop %v370
        %v372 = vmul.f32 %v314, 1.442695
        %v373 = vpow.pop %v372
        %v374 = vmul.f32 %v315, 1.442695
        %v375 = vpow.pop %v374
        %v376 = vmul.f32 %v316, 1.442695
        %v377 = vpow.pop %v376
        %v378 = vmul.f32 %v317, 1.442695
        %v379 = vpow.pop %v378
        %v380 = vmul.f32 %v318, 1.442695
        %v381 = vpow.pop %v380
        %v382 = vmul.f32 %v319, 1.442695
        %v383 = vpow.pop %v382
        %v384 = vadd.f32 %v321, %v323
        %v385 = vadd.f32 %v384, %v325
        %v386 = vadd.f32 %v385, %v327
        %387 = vadd.xlane.f32.xlu0 %v386
        %v388 = vpop.xlane.xlu0 %387
        %v389 = vadd.f32 %v329, %v331
        %v390 = vadd.f32 %v389, %v333
        %v391 = vadd.f32 %v390, %v335
        %392 = vadd.xlane.f32.xlu0 %v391
        %v393 = vpop.xlane.xlu0 %392
        %v394 = vadd.f32 %v337, %v339
        %v395 = vadd.f32 %v394, %v341
        %v396 = vadd.f32 %v395, %v343
        %397 = vadd.xlane.f32.xlu0 %v396
        %v398 = vpop.xlane.xlu0 %397
        %v399 = vadd.f32 %v345, %v347
        %v400 = vadd.f32 %v399, %v349
        %v401 = vadd.f32 %v400, %v351
        %402 = vadd.xlane.f32.xlu0 %v401
        %v403 = vpop.xlane.xlu0 %402
        %v404 = vadd.f32 %v353, %v355
        %v405 = vadd.f32 %v404, %v357
        %v406 = vadd.f32 %v405, %v359
        %407 = vadd.xlane.f32.xlu0 %v406
        %v408 = vpop.xlane.xlu0 %407
        %v409 = vadd.f32 %v361, %v363
        %v410 = vadd.f32 %v409, %v365
        %v411 = vadd.f32 %v410, %v367
        %412 = vadd.xlane.f32.xlu0 %v411
        %v413 = vpop.xlane.xlu0 %412
        %v414 = vadd.f32 %v369, %v371
        %v415 = vadd.f32 %v414, %v373
        %v416 = vadd.f32 %v415, %v375
        %417 = vadd.xlane.f32.xlu0 %v416
        %v418 = vpop.xlane.xlu0 %417
        %v419 = vadd.f32 %v377, %v379
        %v420 = vadd.f32 %v419, %v381
        %v421 = vadd.f32 %v420, %v383
        %422 = vadd.xlane.f32.xlu0 %v421
        %v423 = vpop.xlane.xlu0 %422
        %v424 = vlog2.pop %v388
        %v425 = vmul.f32 %v424, 0.6931472
        %v426 = vlog2.pop %v393
        %v427 = vmul.f32 %v426, 0.6931472
        %v428 = vlog2.pop %v398
        %v429 = vmul.f32 %v428, 0.6931472
        %v430 = vlog2.pop %v403
        %v431 = vmul.f32 %v430, 0.6931472
        %v432 = vlog2.pop %v408
        %v433 = vmul.f32 %v432, 0.6931472
        %v434 = vlog2.pop %v413
        %v435 = vmul.f32 %v434, 0.6931472
        %v436 = vlog2.pop %v418
        %v437 = vmul.f32 %v436, 0.6931472
        %v438 = vlog2.pop %v423
        %v439 = vmul.f32 %v438, 0.6931472
        %v440 = vadd.f32 %v252, %v425
        %v441 = vadd.f32 %v257, %v427
        %v442 = vadd.f32 %v262, %v429
        %v443 = vadd.f32 %v267, %v431
        %v444 = vadd.f32 %v272, %v433
        %v445 = vadd.f32 %v277, %v435
        %v446 = vadd.f32 %v282, %v437
        %v447 = vadd.f32 %v287, %v439
        %v448 = vld [vmem:[%s203] sm:$0xff]
        %v449 = vld [vmem:[%s203 + $0x8] sm:$0xff]
        %v450 = vld [vmem:[%s203 + $0x10] sm:$0xff]
        %v451 = vld [vmem:[%s203 + $0x18] sm:$0xff]
        %v452 = vld [vmem:[%s203 + $0x20] sm:$0xff]
        %v453 = vld [vmem:[%s203 + $0x28] sm:$0xff]
        %v454 = vld [vmem:[%s203 + $0x30] sm:$0xff]
        %v455 = vld [vmem:[%s203 + $0x38] sm:$0xff]
        %v456 = vsub.f32 %v440, %v448
        %v457 = vsub.f32 %v441, %v449
        %v458 = vsub.f32 %v442, %v450
        %v459 = vsub.f32 %v443, %v451
        %v460 = vsub.f32 %v444, %v452
        %v461 = vsub.f32 %v445, %v453
        %v462 = vsub.f32 %v446, %v454
        %v463 = vsub.f32 %v447, %v455
        %472 = vrot.lane.b32.xlu0 %v448, 1
        %v473 = vpop.permute.xlu0 %472
        %474 = vrot.lane.b32.xlu0 %v449, 1
        %v475 = vpop.permute.xlu0 %474
        %476 = vrot.lane.b32.xlu0 %v450, 1
        %v477 = vpop.permute.xlu0 %476
        %478 = vrot.lane.b32.xlu0 %v451, 1
        %v479 = vpop.permute.xlu0 %478
        %480 = vrot.lane.b32.xlu0 %v452, 1
        %v481 = vpop.permute.xlu0 %480
        %482 = vrot.lane.b32.xlu0 %v453, 1
        %v483 = vpop.permute.xlu0 %482
        %484 = vrot.lane.b32.xlu0 %v454, 1
        %v485 = vpop.permute.xlu0 %484
        %486 = vrot.lane.b32.xlu0 %v455, 1
        %v487 = vpop.permute.xlu0 %486
        %v496 = vmul.f32 %v456, %v473
        %v497 = vmul.f32 %v457, %v475
        %v498 = vmul.f32 %v458, %v477
        %v499 = vmul.f32 %v459, %v479
        %v500 = vmul.f32 %v460, %v481
        %v501 = vmul.f32 %v461, %v483
        %v502 = vmul.f32 %v462, %v485
        %v503 = vmul.f32 %v463, %v487
        %512 = vrot.lane.b32.xlu0 %v496, 127
        %v513 = vpop.permute.xlu0 %512
        %514 = vrot.lane.b32.xlu0 %v497, 127
        %v515 = vpop.permute.xlu0 %514
        %516 = vrot.lane.b32.xlu0 %v498, 127
        %v517 = vpop.permute.xlu0 %516
        %518 = vrot.lane.b32.xlu0 %v499, 127
        %v519 = vpop.permute.xlu0 %518
        %520 = vrot.lane.b32.xlu0 %v500, 127
        %v521 = vpop.permute.xlu0 %520
        %522 = vrot.lane.b32.xlu0 %v501, 127
        %v523 = vpop.permute.xlu0 %522
        %524 = vrot.lane.b32.xlu0 %v502, 127
        %v525 = vpop.permute.xlu0 %524
        %526 = vrot.lane.b32.xlu0 %v503, 127
        %v527 = vpop.permute.xlu0 %526
        %vm536 = vcmask 7168
        %537 = vst.msk [vmem:[%s213] sm:$0xff] %vm536, %v513
        %538 = vst.msk [vmem:[%s213 + $0x8] sm:$0xff] %vm536, %v515
        %539 = vst.msk [vmem:[%s213 + $0x10] sm:$0xff] %vm536, %v517
        %540 = vst.msk [vmem:[%s213 + $0x18] sm:$0xff] %vm536, %v519
        %541 = vst.msk [vmem:[%s213 + $0x20] sm:$0xff] %vm536, %v521
        %542 = vst.msk [vmem:[%s213 + $0x28] sm:$0xff] %vm536, %v523
        %543 = vst.msk [vmem:[%s213 + $0x30] sm:$0xff] %vm536, %v525
        %544 = vst.msk [vmem:[%s213 + $0x38] sm:$0xff] %vm536, %v527
        %s545 = sld [smem:[#allocation3 + %s25]]
        %s546 = smul.u32 8, %s545
        %p547 = scmp.lt.s32.totalorder %s546, 15
        %s548 = scalar_select %p547, %s546, 15
        %s549 = smul.addr %s548, 8
        %s550 = scalar_lea.vmem %s3, %s549
        // Predicated region
        $region33: #{tpu_custom_call.1} parent=27 // pred_check
          %p551 = pneg %p101
        $region34: #{tpu_custom_call.1} parent=27 // pred_check_branch
          %553 = sbr.rel (%p551) target = $region36
        $region35: #{tpu_custom_call.1} parent=27 // pred_region
          %s554 = sld [smem:[#allocation3 + %s25]]
          %s555 = smul.u32 8, %s554
        $region36: #{tpu_custom_call.1} parent=27 // pred_fallthru
          _
      $region28: #{tpu_custom_call.1} parent=5 // pred_fallthru
        _
      %p556 = scmp.le.s32.totalorder 2, %s20
      // Predicated region
      $region37: #{tpu_custom_call.1} parent=5 // pred_check
        %p557 = pneg %p556
      $region38: #{tpu_custom_call.1} parent=5 // pred_check_branch
        %559 = sbr.rel (%p557) target = $region40
      $region39: #{tpu_custom_call.1} parent=5 // pred_region
        %s560 = ssub.s32 %s20, 2
        // Predicated region
        $region41: #{tpu_custom_call.1} parent=39 // pred_check
          %p561 = pneg %p107
        $region42: #{tpu_custom_call.1} parent=39 // pred_check_branch
          %563 = sbr.rel (%p561) target = $region44
        $region43: #{tpu_custom_call.1} parent=39 // pred_region
          %s564 = sld [smem:[#allocation3 + %s26]]
          %s565 = smul.u32 8, %s564
          %p566 = scmp.lt.s32.totalorder %s565, 15
          %s567 = scalar_select %p566, %s565, 15
          %s568 = smul.addr %s567, 8
          %s569 = scalar_lea.vmem %s3, %s568
        $region44: #{tpu_custom_call.1} parent=39 // pred_fallthru
          _
      $region40: #{tpu_custom_call.1} parent=5 // pred_fallthru
        _
    $region6: #{tpu_custom_call.1} parent=1 // loop_footer
      %s24 = sadd.s32 1, %s20
    $region7: #{tpu_custom_call.1} parent=1 // loop_footer_branch
      %19 = sbr.rel target = $region3
    $region8: #{tpu_custom_call.1} parent=1 // loop_exit
      _
    %570 = vsyncpa [#allocation5], 1
    %s571 = scalar_lea.sflag [#allocation5], 1
    %572 = vsyncpa %s571, 1

</llo_original>
